<compile_context>
chip_gen: v5e
topology: v5e:2x2
jax: 0.10.0
libtpu: 0.0.40
codegen_flags: <defaults>
</compile_context>

<pallas_src>
import functools

import numpy as np
import jax
import jax.numpy as jnp
from jax.experimental import pallas as pl
from jax.experimental.pallas import tpu as pltpu


def _round_up(x, m):
    return ((x + m - 1) // m) * m


def actor_critic_kernel(
    action_dim, hidden_dim, hidden_pad,            # static (closed over via partial)
    s_ref,                                         # [TILE_B, state_dim]
    w1_ref, b1_ref,                                # [state_dim, H] (compute dtype), [1, H] f32
    w2_ref, b2_ref,                                # [H, H] (compute dtype),        [1, H] f32
    wh_ref, bh_ref,                                # fused head [H, H_pad+128], [1, H_pad+128]
    wc2_ref, bc2_ref,                              # [1, H] f32, [1, 1] f32
    out_ref,                                       # [TILE_B, 128] packed: mean | value | zeros
):
    cd = w1_ref.dtype                              # matmul operand dtype (f32 or bf16)
    x = s_ref[...].astype(cd)

    # feature_extractor: Linear -> ReLU -> Linear -> ReLU  (MXU matmuls, f32 accumulation)
    h1 = jnp.dot(x, w1_ref[...], preferred_element_type=jnp.float32) + b1_ref[...]
    h1 = jnp.maximum(h1, 0.0)
    h2 = jnp.dot(h1.astype(cd), w2_ref[...], preferred_element_type=jnp.float32) + b2_ref[...]
    h2 = jnp.maximum(h2, 0.0)

    # Fused head: columns [0, H) = critic hidden (Wc1), columns [H_pad, H_pad+A) = actor
    # mean (Wa), everything else zero-padded.  One lane-dense MXU matmul.
    head = jnp.dot(h2.astype(cd), wh_ref[...], preferred_element_type=jnp.float32) + bh_ref[...]

    # critic hidden layer + ReLU
    hc = jnp.maximum(head[:, :hidden_dim], 0.0)                      # [TILE_B, H]

    # value = hc @ Wc2 + bc2, done as VPU multiply + XLU lane reduce (avoids an N=1 MXU
    # matmul and a masked 1-lane store; MXU stays free for the fused head matmul).
    val = jnp.sum(hc * wc2_ref[...], axis=-1, keepdims=True) + bc2_ref[...]   # [TILE_B, 1]

    # Packed, lane-dense output slab: head[:, H_pad:] is a 128-aligned, 128-wide slice
    # that already holds the actor mean in lanes [0, A) and exact zeros elsewhere
    # (zero-padded fused weight/bias columns).  Add the value into lane A and do a
    # single unmasked full-width store.
    out_slab = head[:, hidden_pad:]                                  # [TILE_B, 128]
    lane = jax.lax.broadcasted_iota(jnp.int32, out_slab.shape, 1)
    out_ref[...] = out_slab + jnp.where(lane == action_dim, val, 0.0)


def _prepare_kernel_params(p, H, A, H_pad, out_lanes, compute_dtype):
    """Build fused / padded / (optionally bf16-cast) kernel-side parameters."""
    head_n = H_pad + out_lanes
    wh = jnp.zeros((H, head_n), jnp.float32)
    wh = wh.at[:, :H].set(p["wc1"])
    wh = wh.at[:, H_pad:H_pad + A].set(p["wa"])
    bh = jnp.zeros((1, head_n), jnp.float32)
    bh = bh.at[:, :H].set(p["bc1"])
    bh = bh.at[:, H_pad:H_pad + A].set(p["ba"])

    cd = compute_dtype
    return {
        "w1": p["w1"].astype(cd), "b1": p["b1"],
        "w2": p["w2"].astype(cd), "b2": p["b2"],
        "wh": wh.astype(cd), "bh": bh,
        "wc2_row": p["wc2"].T,     # [1, H], kept f32 (value head stays full precision)
        "bc2": p["bc2"],           # [1, 1]
    }


def actor_critic_forward(state, params, *, tile_b=128, compute_dtype=jnp.float32):
    """state: [B, state_dim] f32. params: dict of pre-transposed ([in, out]) weights."""
    B, S = state.shape
    H, A = params["wa"].shape
    H_pad = _round_up(H, 128)
    out_lanes = _round_up(A + 1, 128)       # mean lanes + 1 value lane, lane-aligned

    kp = _prepare_kernel_params(params, H, A, H_pad, out_lanes, compute_dtype)

    # Batch tile: multiple of 8 (f32 sublane), capped by the (padded) batch size.
    tile_b = _round_up(min(max(8, tile_b), _round_up(B, 8)), 8)
    Bp = _round_up(B, tile_b)
    if Bp != B:
        state = jnp.pad(state, ((0, Bp - B), (0, 0)))

    grid = (Bp // tile_b,)
    batch_map = lambda i: (i, 0)            # stream batch tiles
    resident = lambda i: (0, 0)             # same block every step -> weights fetched once

    in_specs = [
        pl.BlockSpec((tile_b, S), batch_map),            # state
        pl.BlockSpec(kp["w1"].shape, resident),
        pl.BlockSpec(kp["b1"].shape, resident),
        pl.BlockSpec(kp["w2"].shape, resident),
        pl.BlockSpec(kp["b2"].shape, resident),
        pl.BlockSpec(kp["wh"].shape, resident),
        pl.BlockSpec(kp["bh"].shape, resident),
        pl.BlockSpec(kp["wc2_row"].shape, resident),
        pl.BlockSpec(kp["bc2"].shape, resident),
    ]

    kernel = functools.partial(actor_critic_kernel, A, H, H_pad)

    packed = pl.pallas_call(
        kernel,
        grid=grid,
        in_specs=in_specs,
        out_specs=pl.BlockSpec((tile_b, out_lanes), batch_map),
        out_shape=jax.ShapeDtypeStruct((Bp, out_lanes), jnp.float32),
        compiler_params=pltpu.CompilerParams(
            dimension_semantics=("parallel",),           # batch steps split across TCs (v7x)
        ),
    )(state, kp["w1"], kp["b1"], kp["w2"], kp["b2"],
      kp["wh"], kp["bh"], kp["wc2_row"], kp["bc2"])

    action_mean = packed[:B, :A]
    value = packed[:B, A:A + 1]
    # action_std is state-independent -> one tiny XLA op outside the kernel.
    action_std = jnp.exp(params["log_std"])
    return action_mean, action_std, value


def _orthogonal(key, shape, gain):
    """Deterministic orthogonal init (gain * Q), matching nn.init.orthogonal_ semantics."""
    init = jax.nn.initializers.orthogonal(scale=gain)
    return init(key, shape, jnp.float32)


def make_params(key, state_dim, action_dim, hidden_dim):
    gain = float(np.sqrt(2.0))
    ks = jax.random.split(key, 5)
    # Weights stored as [in, out] (transposed relative to PyTorch's [out, in]).
    return {
        "w1": _orthogonal(ks[0], (state_dim, hidden_dim), gain),
        "b1": jnp.zeros((1, hidden_dim), jnp.float32),
        "w2": _orthogonal(ks[1], (hidden_dim, hidden_dim), gain),
        "b2": jnp.zeros((1, hidden_dim), jnp.float32),
        "wa": _orthogonal(ks[2], (hidden_dim, action_dim), gain),
        "ba": jnp.zeros((1, action_dim), jnp.float32),
        "wc1": _orthogonal(ks[3], (hidden_dim, hidden_dim), gain),
        "bc1": jnp.zeros((1, hidden_dim), jnp.float32),
        "wc2": _orthogonal(ks[4], (hidden_dim, 1), gain),
        "bc2": jnp.zeros((1, 1), jnp.float32),
        "log_std": jnp.zeros((1, action_dim), jnp.float32),
    }


def reference_forward(state, p, compute_dtype=jnp.float32):
    """Pure-JAX reference with the original (unfused) module structure."""
    cd = compute_dtype

    def mm(x, w):
        return jnp.dot(x.astype(cd), w.astype(cd), preferred_element_type=jnp.float32)

    h = jnp.maximum(mm(state, p["w1"]) + p["b1"], 0.0)
    h = jnp.maximum(mm(h, p["w2"]) + p["b2"], 0.0)
    mean = mm(h, p["wa"]) + p["ba"]
    std = jnp.exp(p["log_std"])
    hc = jnp.maximum(mm(h, p["wc1"]) + p["bc1"], 0.0)
    val = jnp.dot(hc, p["wc2"], preferred_element_type=jnp.float32) + p["bc2"]
    return mean, std, val


if __name__ == "__main__":
    state_dim, action_dim, hidden_dim = 16, 4, 128
    B = 200  # deliberately NOT a multiple of the batch tile: exercises padding + 2-step grid

    key = jax.random.PRNGKey(0)
    k_state, k_params = jax.random.split(key)
    state = jax.random.normal(k_state, (B, state_dim), jnp.float32)
    params = make_params(k_params, state_dim, action_dim, hidden_dim)

    # --- f32 path ---------------------------------------------------------------
    mean, std, value = actor_critic_forward(state, params, tile_b=128)
    jax.block_until_ready((mean, std, value))

    r_mean, r_std, r_val = reference_forward(state, params)
    np.testing.assert_allclose(np.asarray(mean), np.asarray(r_mean), rtol=5e-4, atol=5e-4)
    np.testing.assert_allclose(np.asarray(std), np.asarray(r_std), rtol=5e-4, atol=5e-4)
    np.testing.assert_allclose(np.asarray(value), np.asarray(r_val), rtol=5e-4, atol=5e-4)

    assert mean.shape == (B, action_dim)
    assert std.shape == (1, action_dim)
    assert value.shape == (B, 1)

    # --- bf16 MXU-operand path (recommended on v6e/v7x; f32 accumulation) --------
    mean_bf, std_bf, value_bf = actor_critic_forward(
        state, params, tile_b=128, compute_dtype=jnp.bfloat16)
    jax.block_until_ready((mean_bf, std_bf, value_bf))

    rb_mean, _, rb_val = reference_forward(state, params, compute_dtype=jnp.bfloat16)
    np.testing.assert_allclose(np.asarray(mean_bf), np.asarray(rb_mean), rtol=2e-2, atol=2e-2)
    np.testing.assert_allclose(np.asarray(value_bf), np.asarray(rb_val), rtol=2e-2, atol=2e-2)

    # TODO(synk): get_action / evaluate_action (Normal sampling, log_prob, entropy) are
    # distribution utilities outside forward(); implement in plain JAX if needed.
    print("KERNEL_OK")
</pallas_src>

<mosaic_0001>
module attributes {stable_mosaic.version = 11 : i64} {
  func.func @actor_critic_kernel(%arg0: i32, %arg1: memref<128x16xf32, #tpu.memory_space<vmem>>, %arg2: memref<16x128xf32, #tpu.memory_space<vmem>>, %arg3: memref<1x128xf32, #tpu.memory_space<vmem>>, %arg4: memref<128x128xf32, #tpu.memory_space<vmem>>, %arg5: memref<1x128xf32, #tpu.memory_space<vmem>>, %arg6: memref<128x256xf32, #tpu.memory_space<vmem>>, %arg7: memref<1x256xf32, #tpu.memory_space<vmem>>, %arg8: memref<1x128xf32, #tpu.memory_space<vmem>>, %arg9: memref<1x1xf32, #tpu.memory_space<vmem>>, %arg10: memref<128x128xf32, #tpu.memory_space<vmem>>) attributes {dimension_semantics = [#tpu.dimension_semantics<parallel>], iteration_bounds = array<i64: 2>, scalar_prefetch = 0 : i64, scratch_operands = 0 : i64, tpu.core_type = #tpu.core_type<tc>, window_params = [{transform_indices = @transform_0, window_bounds = array<i64: 128, 16>}, {pipeline_mode = #tpu.pipeline_mode<synchronous>, transform_indices = @transform_1, window_bounds = array<i64: 16, 128>}, {pipeline_mode = #tpu.pipeline_mode<synchronous>, transform_indices = @transform_2, window_bounds = array<i64: 1, 128>}, {pipeline_mode = #tpu.pipeline_mode<synchronous>, transform_indices = @transform_3, window_bounds = array<i64: 128, 128>}, {pipeline_mode = #tpu.pipeline_mode<synchronous>, transform_indices = @transform_4, window_bounds = array<i64: 1, 128>}, {pipeline_mode = #tpu.pipeline_mode<synchronous>, transform_indices = @transform_5, window_bounds = array<i64: 128, 256>}, {pipeline_mode = #tpu.pipeline_mode<synchronous>, transform_indices = @transform_6, window_bounds = array<i64: 1, 256>}, {pipeline_mode = #tpu.pipeline_mode<synchronous>, transform_indices = @transform_7, window_bounds = array<i64: 1, 128>}, {pipeline_mode = #tpu.pipeline_mode<synchronous>, transform_indices = @transform_8, window_bounds = array<i64: 1, 1>}, {transform_indices = @transform_9, window_bounds = array<i64: 128, 128>}]} {
    %c0 = arith.constant 0 : index
    %c0_0 = arith.constant 0 : index
    %0 = vector.load %arg1[%c0, %c0_0] : memref<128x16xf32, #tpu.memory_space<vmem>>, vector<128x16xf32>
    %c0_1 = arith.constant 0 : index
    %c0_2 = arith.constant 0 : index
    %1 = vector.load %arg2[%c0_1, %c0_2] : memref<16x128xf32, #tpu.memory_space<vmem>>, vector<16x128xf32>
    %cst = arith.constant dense<0.000000e+00> : vector<128x128xf32>
    %2 = tpu.matmul %0, %1, %cst {dimension_numbers = #tpu.dot_dimension_numbers<[1], [0], [0], [1], [0, 0, 1, 1], [], []>} : vector<128x16xf32>, vector<16x128xf32>, vector<128x128xf32> -> vector<128x128xf32>
    %c0_3 = arith.constant 0 : index
    %c0_4 = arith.constant 0 : index
    %3 = vector.load %arg3[%c0_3, %c0_4] : memref<1x128xf32, #tpu.memory_space<vmem>>, vector<1x128xf32>
    %4 = vector.broadcast %3 : vector<1x128xf32> to vector<128x128xf32>
    %5 = arith.addf %2, %4 : vector<128x128xf32>
    %cst_5 = arith.constant 0.000000e+00 : f32
    %6 = vector.broadcast %cst_5 : f32 to vector<128x128xf32>
    %7 = arith.maximumf %5, %6 : vector<128x128xf32>
    %c0_6 = arith.constant 0 : index
    %c0_7 = arith.constant 0 : index
    %8 = vector.load %arg4[%c0_6, %c0_7] : memref<128x128xf32, #tpu.memory_space<vmem>>, vector<128x128xf32>
    %cst_8 = arith.constant dense<0.000000e+00> : vector<128x128xf32>
    %9 = tpu.matmul %7, %8, %cst_8 {dimension_numbers = #tpu.dot_dimension_numbers<[1], [0], [0], [1], [0, 0, 1, 1], [], []>} : vector<128x128xf32>, vector<128x128xf32>, vector<128x128xf32> -> vector<128x128xf32>
    %c0_9 = arith.constant 0 : index
    %c0_10 = arith.constant 0 : index
    %10 = vector.load %arg5[%c0_9, %c0_10] : memref<1x128xf32, #tpu.memory_space<vmem>>, vector<1x128xf32>
    %11 = vector.broadcast %10 : vector<1x128xf32> to vector<128x128xf32>
    %12 = arith.addf %9, %11 : vector<128x128xf32>
    %cst_11 = arith.constant 0.000000e+00 : f32
    %13 = vector.broadcast %cst_11 : f32 to vector<128x128xf32>
    %14 = arith.maximumf %12, %13 : vector<128x128xf32>
    %c0_12 = arith.constant 0 : index
    %c0_13 = arith.constant 0 : index
    %15 = vector.load %arg6[%c0_12, %c0_13] : memref<128x256xf32, #tpu.memory_space<vmem>>, vector<128x256xf32>
    %cst_14 = arith.constant dense<0.000000e+00> : vector<128x256xf32>
    %16 = tpu.matmul %14, %15, %cst_14 {dimension_numbers = #tpu.dot_dimension_numbers<[1], [0], [0], [1], [0, 0, 1, 1], [], []>} : vector<128x128xf32>, vector<128x256xf32>, vector<128x256xf32> -> vector<128x256xf32>
    %c0_15 = arith.constant 0 : index
    %c0_16 = arith.constant 0 : index
    %17 = vector.load %arg7[%c0_15, %c0_16] : memref<1x256xf32, #tpu.memory_space<vmem>>, vector<1x256xf32>
    %18 = vector.broadcast %17 : vector<1x256xf32> to vector<128x256xf32>
    %19 = arith.addf %16, %18 : vector<128x256xf32>
    %20 = vector.extract_strided_slice %19 {offsets = [0, 0], sizes = [128, 128], strides = [1, 1]} : vector<128x256xf32> to vector<128x128xf32>
    %cst_17 = arith.constant 0.000000e+00 : f32
    %21 = vector.broadcast %cst_17 : f32 to vector<128x128xf32>
    %22 = arith.maximumf %20, %21 : vector<128x128xf32>
    %c0_18 = arith.constant 0 : index
    %c0_19 = arith.constant 0 : index
    %23 = vector.load %arg8[%c0_18, %c0_19] : memref<1x128xf32, #tpu.memory_space<vmem>>, vector<1x128xf32>
    %24 = vector.broadcast %23 : vector<1x128xf32> to vector<128x128xf32>
    %25 = arith.mulf %22, %24 : vector<128x128xf32>
    %cst_20 = arith.constant dense<0.000000e+00> : vector<128xf32>
    %26 = vector.multi_reduction <add>, %25, %cst_20 [1] : vector<128x128xf32> to vector<128xf32>
    %27 = vector.shape_cast %26 : vector<128xf32> to vector<128x1xf32>
    %c0_21 = arith.constant 0 : index
    %c0_22 = arith.constant 0 : index
    %28 = vector.load %arg9[%c0_21, %c0_22] : memref<1x1xf32, #tpu.memory_space<vmem>>, vector<1x1xf32>
    %29 = vector.broadcast %28 : vector<1x1xf32> to vector<128x1xf32>
    %30 = arith.addf %27, %29 : vector<128x1xf32>
    %31 = vector.extract_strided_slice %19 {offsets = [0, 128], sizes = [128, 128], strides = [1, 1]} : vector<128x256xf32> to vector<128x128xf32>
    %32 = tpu.iota {dimensions = array<i32: 1>} : vector<128x128xi32>
    %c4_i32 = arith.constant 4 : i32
    %33 = vector.broadcast %c4_i32 : i32 to vector<128x128xi32>
    %34 = arith.cmpi eq, %32, %33 : vector<128x128xi32>
    %cst_23 = arith.constant 0.000000e+00 : f32
    %35 = vector.shape_cast %30 : vector<128x1xf32> to vector<128x1xf32>
    %36 = vector.broadcast %35 : vector<128x1xf32> to vector<128x128xf32>
    %37 = vector.broadcast %cst_23 : f32 to vector<128x128xf32>
    %38 = arith.select %34, %36, %37 : vector<128x128xi1>, vector<128x128xf32>
    %39 = arith.addf %31, %38 : vector<128x128xf32>
    %c0_24 = arith.constant 0 : index
    %c0_25 = arith.constant 0 : index
    %40 = vector.load %arg10[%c0_24, %c0_25] : memref<128x128xf32, #tpu.memory_space<vmem>>, vector<128x128xf32>
    tpu.vector_store %arg10[%c0_24, %c0_25], %39 {strides = array<i32>} : memref<128x128xf32, #tpu.memory_space<vmem>>, vector<128x128xf32>,
    return
  }
  func.func @transform_0(%arg0: i32) -> (i32, i32) {
    %c0_i32 = arith.constant 0 : i32
    %c0_i32_0 = arith.constant 0 : i32
    return %arg0, %c0_i32 : i32, i32
  }
  func.func @transform_1(%arg0: i32) -> (i32, i32) {
    %c0_i32 = arith.constant 0 : i32
    %c0_i32_0 = arith.constant 0 : i32
    %c0_i32_1 = arith.constant 0 : i32
    return %c0_i32, %c0_i32_0 : i32, i32
  }
  func.func @transform_2(%arg0: i32) -> (i32, i32) {
    %c0_i32 = arith.constant 0 : i32
    %c0_i32_0 = arith.constant 0 : i32
    %c0_i32_1 = arith.constant 0 : i32
    return %c0_i32, %c0_i32_0 : i32, i32
  }
  func.func @transform_3(%arg0: i32) -> (i32, i32) {
    %c0_i32 = arith.constant 0 : i32
    %c0_i32_0 = arith.constant 0 : i32
    %c0_i32_1 = arith.constant 0 : i32
    return %c0_i32, %c0_i32_0 : i32, i32
  }
  func.func @transform_4(%arg0: i32) -> (i32, i32) {
    %c0_i32 = arith.constant 0 : i32
    %c0_i32_0 = arith.constant 0 : i32
    %c0_i32_1 = arith.constant 0 : i32
    return %c0_i32, %c0_i32_0 : i32, i32
  }
  func.func @transform_5(%arg0: i32) -> (i32, i32) {
    %c0_i32 = arith.constant 0 : i32
    %c0_i32_0 = arith.constant 0 : i32
    %c0_i32_1 = arith.constant 0 : i32
    return %c0_i32, %c0_i32_0 : i32, i32
  }
  func.func @transform_6(%arg0: i32) -> (i32, i32) {
    %c0_i32 = arith.constant 0 : i32
    %c0_i32_0 = arith.constant 0 : i32
    %c0_i32_1 = arith.constant 0 : i32
    return %c0_i32, %c0_i32_0 : i32, i32
  }
  func.func @transform_7(%arg0: i32) -> (i32, i32) {
    %c0_i32 = arith.constant 0 : i32
    %c0_i32_0 = arith.constant 0 : i32
    %c0_i32_1 = arith.constant 0 : i32
    return %c0_i32, %c0_i32_0 : i32, i32
  }
  func.func @transform_8(%arg0: i32) -> (i32, i32) {
    %c0_i32 = arith.constant 0 : i32
    %c0_i32_0 = arith.constant 0 : i32
    %c0_i32_1 = arith.constant 0 : i32
    return %c0_i32, %c0_i32_0 : i32, i32
  }
  func.func @transform_9(%arg0: i32) -> (i32, i32) {
    %c0_i32 = arith.constant 0 : i32
    %c0_i32_0 = arith.constant 0 : i32
    return %arg0, %c0_i32 : i32, i32
  }
}

</mosaic_0001>

<llo_original>
// kernel: tpu_custom_call.1
$region0: #{tpu_custom_call.1}
  #allocation0 [shape = 'u32[]', space=smem, size = 0x4, offset = 0x4, fixed_abs, tag = 'smem constant byte address 0x4 - core index']
  #allocation1 [shape = 'u32[72,128]{1,0:T(1,128)}', space=vmem, size = 0x9000, scoped, tag = 'internal scratch']
  #allocation2 [shape = 'f32[1,1]{1,0:T(1,128)S(1)}', space=vmem, size = 0x200, scoped, tag = 'scoped memory for tpu_custom_call.1']
  %s0 = inlined_call_operand.vmem [shape: f32[256,16], index: 0, kind: input, shape index: {}]
  %s1 = inlined_call_operand.vmem [shape: f32[16,128], index: 1, kind: input, shape index: {}]
  %s2 = inlined_call_operand.vmem [shape: f32[1,128], index: 2, kind: input, shape index: {}]
  %s3 = inlined_call_operand.hbm [shape: f32[128,128], index: 3, kind: input, shape index: {}]
  %s4 = inlined_call_operand.vmem [shape: f32[1,128], index: 4, kind: input, shape index: {}]
  %s5 = inlined_call_operand.vmem [shape: f32[128,256], index: 5, kind: input, shape index: {}]
  %s6 = inlined_call_operand.vmem [shape: f32[1,256], index: 6, kind: input, shape index: {}]
  %s7 = inlined_call_operand.vmem [shape: f32[1,128], index: 7, kind: input, shape index: {}]
  %s8 = inlined_call_operand.<no memory space> [shape: f32[1,1], index: 8, kind: input, shape index: {}]
  %s9 = inlined_call_operand.hbm [shape: f32[256,128], index: 9, kind: output, shape index: {}]
  %s10 = sld [smem:[#allocation0]]
  $region73: #{tpu_custom_call.1} parent=0
    _
  %s12 = ssub.s32 1, %s10
  %s13 = scalar_select 0, %s12, %s10
  %v14 = vstv %s8
  %15 = vst [vmem:[#allocation2] sm:$0x1] %v14
  $region1: #{tpu_custom_call.1} parent=0
    #allocation3 [shape = 'u8[65536]{0}', space=vmem, size = 0x10000, scoped, tag = 'input window, operand 3, single buffered']
    #allocation4 [shape = 's32[2]{0}', space=sflag, size = 0x8, scoped, tag = 'scoped memory for tpu_custom_call.1']
    #allocation5 [shape = 's32[2]{0}', space=sflag, size = 0x8, scoped, tag = 'scoped memory for tpu_custom_call.1']
    #allocation6 [shape = 'u8[131072]{0}', space=vmem, size = 0x20000, scoped, tag = 'output window, operand 0']
    %16 = vsyncpa [#allocation4], 0
    %17 = vsyncpa [#allocation5], 0
    %s18 = scalar_lea.sflag [#allocation5], 1
    %19 = vsyncpa %s18, 0
    loop: start=0, step=1, limit=4
    $region2: #{tpu_custom_call.1} parent=1 // loop_pre_header
      _
    $region3: #{tpu_custom_call.1} parent=1 // loop_header
      %s21 = sphi 0, %s25
      %p22 = scmp.ge.s32.totalorder %s21, 4
      %s31 = sphi 0, %s33
      %s34 = sphi 0, %s31
      %s35 = sphi 0, %s34
      %s51 = sphi 0, %s35
      %s55 = sphi 0, %s55
      %s57 = sphi 0, %s55
      %s58 = sphi 0, %s57
      %s72 = sphi 0, %s58
      %s76 = sphi 0, %s76
      %s78 = sphi 0, %s76
      %s79 = sphi 0, %s78
      %s93 = sphi 0, %s79
      %s97 = sphi 0, %s97
      %s99 = sphi 0, %s97
      %s100 = sphi 0, %s99
      %s114 = sphi 0, %s100
      %s118 = sphi 0, %s118
      %s120 = sphi 0, %s118
      %s121 = sphi 0, %s120
      %s135 = sphi 0, %s121
      %s139 = sphi 0, %s139
      %s141 = sphi 0, %s139
      %s142 = sphi 0, %s141
      %s156 = sphi 0, %s142
      %s160 = sphi 0, %s160
      %s162 = sphi 0, %s160
      %s163 = sphi 0, %s162
      %s177 = sphi 0, %s163
      %s181 = sphi 0, %s181
      %s183 = sphi 0, %s181
      %s184 = sphi 0, %s183
      %s198 = sphi 0, %s184
      %s202 = sphi 0, %s202
      %s204 = sphi 0, %s202
      %s205 = sphi 0, %s204
      %s219 = sphi 0, %s205
      %s225 = sphi 0, %s227
      %s228 = sphi 0, %s225
      %s229 = sphi 0, %s228
      %s245 = sphi 0, %s229
    $region4: #{tpu_custom_call.1} parent=1 // loop_header_branch
      %24 = sbr.rel (%p22) target = $region8
    $region5: #{tpu_custom_call.1} parent=1 // loop_body
      %s26 = ssub.s32 %s21, 1
      %s27 = ssub.s32 %s21, 2
      %s28 = sadd.s32 %s21, 1
      %s29 = ssub.s32 %s21, %s28
      %p30 = scmp.eq.s32.totalorder %s29, 0
      %s32 = sadd.s32 %s31, 1
      %s33 = scalar_select %p30, %s31, %s32
      %p36 = pneg %p30
      %p37 = scmp.eq.s32.totalorder %s21, 1
      %p38 = por %p36, %p37
      %p39 = scmp.ne.s32.totalorder %s31, %s34
      %p40 = scmp.eq.s32.totalorder %s21, 0
      %p41 = por %p39, %p40
      %p42 = scmp.ne.s32.totalorder %s31, %s34
      %p43 = scmp.eq.s32.totalorder %s26, 1
      %p44 = por %p42, %p43
      %p45 = scmp.ne.s32.totalorder %s34, %s35
      %p46 = scmp.eq.s32.totalorder %s26, 0
      %p47 = por %p45, %p46
      %p48 = scmp.ne.s32.totalorder %s34, %s35
      %p49 = scmp.eq.s32.totalorder %s27, 1
      %p50 = por %p48, %p49
      %p52 = scmp.ne.s32.totalorder %s35, %s51
      %p53 = scmp.eq.s32.totalorder %s27, 0
      %p54 = por %p52, %p53
      %s56 = sadd.s32 %s55, 1
      %p59 = scmp.eq.s32.totalorder %s21, 1
      %p60 = scmp.ne.s32.totalorder %s55, %s57
      %p61 = scmp.eq.s32.totalorder %s21, 0
      %p62 = por %p60, %p61
      %p63 = scmp.ne.s32.totalorder %s55, %s57
      %p64 = scmp.eq.s32.totalorder %s26, 1
      %p65 = por %p63, %p64
      %p66 = scmp.ne.s32.totalorder %s57, %s58
      %p67 = scmp.eq.s32.totalorder %s26, 0
      %p68 = por %p66, %p67
      %p69 = scmp.ne.s32.totalorder %s57, %s58
      %p70 = scmp.eq.s32.totalorder %s27, 1
      %p71 = por %p69, %p70
      %p73 = scmp.ne.s32.totalorder %s58, %s72
      %p74 = scmp.eq.s32.totalorder %s27, 0
      %p75 = por %p73, %p74
      %s77 = sadd.s32 %s76, 1
      %p80 = scmp.eq.s32.totalorder %s21, 1
      %p81 = scmp.ne.s32.totalorder %s76, %s78
      %p82 = scmp.eq.s32.totalorder %s21, 0
      %p83 = por %p81, %p82
      %p84 = scmp.ne.s32.totalorder %s76, %s78
      %p85 = scmp.eq.s32.totalorder %s26, 1
      %p86 = por %p84, %p85
      %p87 = scmp.ne.s32.totalorder %s78, %s79
      %p88 = scmp.eq.s32.totalorder %s26, 0
      %p89 = por %p87, %p88
      %p90 = scmp.ne.s32.totalorder %s78, %s79
      %p91 = scmp.eq.s32.totalorder %s27, 1
      %p92 = por %p90, %p91
      %p94 = scmp.ne.s32.totalorder %s79, %s93
      %p95 = scmp.eq.s32.totalorder %s27, 0
      %p96 = por %p94, %p95
      %s98 = sadd.s32 %s97, 1
      %p101 = scmp.eq.s32.totalorder %s21, 1
      %p102 = scmp.ne.s32.totalorder %s97, %s99
      %p103 = scmp.eq.s32.totalorder %s21, 0
      %p104 = por %p102, %p103
      %p105 = scmp.ne.s32.totalorder %s97, %s99
      %p106 = scmp.eq.s32.totalorder %s26, 1
      %p107 = por %p105, %p106
      %p108 = scmp.ne.s32.totalorder %s99, %s100
      %p109 = scmp.eq.s32.totalorder %s26, 0
      %p110 = por %p108, %p109
      %p111 = scmp.ne.s32.totalorder %s99, %s100
      %p112 = scmp.eq.s32.totalorder %s27, 1
      %p113 = por %p111, %p112
      %p115 = scmp.ne.s32.totalorder %s100, %s114
      %p116 = scmp.eq.s32.totalorder %s27, 0
      %p117 = por %p115, %p116
      %s119 = sadd.s32 %s118, 1
      %p122 = scmp.eq.s32.totalorder %s21, 1
      %p123 = scmp.ne.s32.totalorder %s118, %s120
      %p124 = scmp.eq.s32.totalorder %s21, 0
      %p125 = por %p123, %p124
      %p126 = scmp.ne.s32.totalorder %s118, %s120
      %p127 = scmp.eq.s32.totalorder %s26, 1
      %p128 = por %p126, %p127
      %p129 = scmp.ne.s32.totalorder %s120, %s121
      %p130 = scmp.eq.s32.totalorder %s26, 0
      %p131 = por %p129, %p130
      %p132 = scmp.ne.s32.totalorder %s120, %s121
      %p133 = scmp.eq.s32.totalorder %s27, 1
      %p134 = por %p132, %p133
      %p136 = scmp.ne.s32.totalorder %s121, %s135
      %p137 = scmp.eq.s32.totalorder %s27, 0
      %p138 = por %p136, %p137
      %s140 = sadd.s32 %s139, 1
      %p143 = scmp.eq.s32.totalorder %s21, 1
      %p144 = scmp.ne.s32.totalorder %s139, %s141
      %p145 = scmp.eq.s32.totalorder %s21, 0
      %p146 = por %p144, %p145
      %p147 = scmp.ne.s32.totalorder %s139, %s141
      %p148 = scmp.eq.s32.totalorder %s26, 1
      %p149 = por %p147, %p148
      %p150 = scmp.ne.s32.totalorder %s141, %s142
      %p151 = scmp.eq.s32.totalorder %s26, 0
      %p152 = por %p150, %p151
      %p153 = scmp.ne.s32.totalorder %s141, %s142
      %p154 = scmp.eq.s32.totalorder %s27, 1
      %p155 = por %p153, %p154
      %p157 = scmp.ne.s32.totalorder %s142, %s156
      %p158 = scmp.eq.s32.totalorder %s27, 0
      %p159 = por %p157, %p158
      %s161 = sadd.s32 %s160, 1
      %p164 = scmp.eq.s32.totalorder %s21, 1
      %p165 = scmp.ne.s32.totalorder %s160, %s162
      %p166 = scmp.eq.s32.totalorder %s21, 0
      %p167 = por %p165, %p166
      %p168 = scmp.ne.s32.totalorder %s160, %s162
      %p169 = scmp.eq.s32.totalorder %s26, 1
      %p170 = por %p168, %p169
      %p171 = scmp.ne.s32.totalorder %s162, %s163
      %p172 = scmp.eq.s32.totalorder %s26, 0
      %p173 = por %p171, %p172
      %p174 = scmp.ne.s32.totalorder %s162, %s163
      %p175 = scmp.eq.s32.totalorder %s27, 1
      %p176 = por %p174, %p175
      %p178 = scmp.ne.s32.totalorder %s163, %s177
      %p179 = scmp.eq.s32.totalorder %s27, 0
      %p180 = por %p178, %p179
      %s182 = sadd.s32 %s181, 1
      %p185 = scmp.eq.s32.totalorder %s21, 1
      %p186 = scmp.ne.s32.totalorder %s181, %s183
      %p187 = scmp.eq.s32.totalorder %s21, 0
      %p188 = por %p186, %p187
      %p189 = scmp.ne.s32.totalorder %s181, %s183
      %p190 = scmp.eq.s32.totalorder %s26, 1
      %p191 = por %p189, %p190
      %p192 = scmp.ne.s32.totalorder %s183, %s184
      %p193 = scmp.eq.s32.totalorder %s26, 0
      %p194 = por %p192, %p193
      %p195 = scmp.ne.s32.totalorder %s183, %s184
      %p196 = scmp.eq.s32.totalorder %s27, 1
      %p197 = por %p195, %p196
      %p199 = scmp.ne.s32.totalorder %s184, %s198
      %p200 = scmp.eq.s32.totalorder %s27, 0
      %p201 = por %p199, %p200
      %s203 = sadd.s32 %s202, 1
      %p206 = scmp.eq.s32.totalorder %s21, 1
      %p207 = scmp.ne.s32.totalorder %s202, %s204
      %p208 = scmp.eq.s32.totalorder %s21, 0
      %p209 = por %p207, %p208
      %p210 = scmp.ne.s32.totalorder %s202, %s204
      %p211 = scmp.eq.s32.totalorder %s26, 1
      %p212 = por %p210, %p211
      %p213 = scmp.ne.s32.totalorder %s204, %s205
      %p214 = scmp.eq.s32.totalorder %s26, 0
      %p215 = por %p213, %p214
      %p216 = scmp.ne.s32.totalorder %s204, %s205
      %p217 = scmp.eq.s32.totalorder %s27, 1
      %p218 = por %p216, %p217
      %p220 = scmp.ne.s32.totalorder %s205, %s219
      %p221 = scmp.eq.s32.totalorder %s27, 0
      %p222 = por %p220, %p221
      %s223 = ssub.s32 %s21, %s28
      %p224 = scmp.eq.s32.totalorder %s223, 0
      %s226 = sadd.s32 %s225, 1
      %s227 = scalar_select %p224, %s225, %s226
      %p230 = pneg %p224
      %p231 = scmp.eq.s32.totalorder %s21, 1
      %p232 = por %p230, %p231
      %p233 = scmp.ne.s32.totalorder %s225, %s228
      %p234 = scmp.eq.s32.totalorder %s21, 0
      %p235 = por %p233, %p234
      %p236 = scmp.ne.s32.totalorder %s225, %s228
      %p237 = scmp.eq.s32.totalorder %s26, 1
      %p238 = por %p236, %p237
      %p239 = scmp.ne.s32.totalorder %s228, %s229
      %p240 = scmp.eq.s32.totalorder %s26, 0
      %p241 = por %p239, %p240
      %p242 = scmp.ne.s32.totalorder %s228, %s229
      %p243 = scmp.eq.s32.totalorder %s27, 1
      %p244 = por %p242, %p243
      %p246 = scmp.ne.s32.totalorder %s229, %s245
      %p247 = scmp.eq.s32.totalorder %s27, 0
      %p248 = por %p246, %p247
      %p249 = scmp.le.s32.totalorder 1, %s21
      %p250 = scmp.lt.s32.totalorder %s21, 3
      %p251 = pnand %p249, %p250
      %p252 = pneg %p251
      // Predicated region
      $region9: #{tpu_custom_call.1} parent=5 // pred_check
        _
      $region10: #{tpu_custom_call.1} parent=5 // pred_check_branch
        %254 = sbr.rel (%p251) target = $region12
      $region11: #{tpu_custom_call.1} parent=5 // pred_region
        %s255 = ssub.s32 %s21, 1
        // Predicated region
        $region13: #{tpu_custom_call.1} parent=11 // pred_check
          %p256 = pneg %p68
        $region14: #{tpu_custom_call.1} parent=11 // pred_check_branch
          %258 = sbr.rel (%p256) target = $region16
        $region15: #{tpu_custom_call.1} parent=11 // pred_region
          _
        $region16: #{tpu_custom_call.1} parent=11 // pred_fallthru
          _
        // Predicated region
        $region17: #{tpu_custom_call.1} parent=11 // pred_check
          %p259 = pneg %p89
        $region18: #{tpu_custom_call.1} parent=11 // pred_check_branch
          %261 = sbr.rel (%p259) target = $region20
        $region19: #{tpu_custom_call.1} parent=11 // pred_region
          _
        $region20: #{tpu_custom_call.1} parent=11 // pred_fallthru
          _
        // Predicated region
        $region21: #{tpu_custom_call.1} parent=11 // pred_check
          %p262 = pneg %p110
        $region22: #{tpu_custom_call.1} parent=11 // pred_check_branch
          %264 = sbr.rel (%p262) target = $region24
        $region23: #{tpu_custom_call.1} parent=11 // pred_region
          %266 = vsyncadd [#allocation4], 0
          %s267 = sshll.u32 %s3, 4
          %s268 = int_to_ptr.hbm [resolvable:$true] %s267
          %s269 = sshll.u32 [#allocation3], 4
          %s270 = int_to_ptr.vmem [resolvable:$true] %s269
          %275 = dma.hbm_to_vmem [thread:$0]  %s268, 2048, %s270, [#allocation4], 128, 128, 8
        $region24: #{tpu_custom_call.1} parent=11 // pred_fallthru
          _
        // Predicated region
        $region25: #{tpu_custom_call.1} parent=11 // pred_check
          %p276 = pneg %p131
        $region26: #{tpu_custom_call.1} parent=11 // pred_check_branch
          %278 = sbr.rel (%p276) target = $region28
        $region27: #{tpu_custom_call.1} parent=11 // pred_region
          _
        $region28: #{tpu_custom_call.1} parent=11 // pred_fallthru
          _
        // Predicated region
        $region29: #{tpu_custom_call.1} parent=11 // pred_check
          %p279 = pneg %p152
        $region30: #{tpu_custom_call.1} parent=11 // pred_check_branch
          %281 = sbr.rel (%p279) target = $region32
        $region31: #{tpu_custom_call.1} parent=11 // pred_region
          _
        $region32: #{tpu_custom_call.1} parent=11 // pred_fallthru
          _
        // Predicated region
        $region33: #{tpu_custom_call.1} parent=11 // pred_check
          %p282 = pneg %p173
        $region34: #{tpu_custom_call.1} parent=11 // pred_check_branch
          %284 = sbr.rel (%p282) target = $region36
        $region35: #{tpu_custom_call.1} parent=11 // pred_region
          _
        $region36: #{tpu_custom_call.1} parent=11 // pred_fallthru
          _
        // Predicated region
        $region37: #{tpu_custom_call.1} parent=11 // pred_check
          %p285 = pneg %p194
        $region38: #{tpu_custom_call.1} parent=11 // pred_check_branch
          %287 = sbr.rel (%p285) target = $region40
        $region39: #{tpu_custom_call.1} parent=11 // pred_region
          _
        $region40: #{tpu_custom_call.1} parent=11 // pred_fallthru
          _
        // Predicated region
        $region41: #{tpu_custom_call.1} parent=11 // pred_check
          %p288 = pneg %p215
        $region42: #{tpu_custom_call.1} parent=11 // pred_check_branch
          %290 = sbr.rel (%p288) target = $region44
        $region43: #{tpu_custom_call.1} parent=11 // pred_region
          _
        $region44: #{tpu_custom_call.1} parent=11 // pred_fallthru
          _
      $region12: #{tpu_custom_call.1} parent=5 // pred_fallthru
        _
      %p291 = scmp.lt.s32.totalorder %s21, 2
      // Predicated region
      $region45: #{tpu_custom_call.1} parent=5 // pred_check
        %p292 = pneg %p291
      $region46: #{tpu_custom_call.1} parent=5 // pred_check_branch
        %294 = sbr.rel (%p292) target = $region48
      $region47: #{tpu_custom_call.1} parent=5 // pred_region
        // Predicated region
        $region49: #{tpu_custom_call.1} parent=47 // pred_check
          %p295 = pneg %p41
        $region50: #{tpu_custom_call.1} parent=47 // pred_check_branch
          %297 = sbr.rel (%p295) target = $region52
        $region51: #{tpu_custom_call.1} parent=47 // pred_region
          %s298 = smul.u32 16, %s21
          %p299 = scmp.lt.s32.totalorder %s298, 31
          %s300 = scalar_select %p299, %s298, 31
          %s301 = smul.addr %s300, 8
          %s302 = scalar_lea.vmem %s0, %s301
          %s303 = smul.u32 16, %s21
        $region52: #{tpu_custom_call.1} parent=47 // pred_fallthru
          _
      $region48: #{tpu_custom_call.1} parent=5 // pred_fallthru
        _
      %p304 = scmp.le.s32.totalorder 1, %s21
      %p305 = scmp.lt.s32.totalorder %s21, 3
      %p306 = pnand %p304, %p305
      %p307 = pneg %p306
      // Predicated region
      $region53: #{tpu_custom_call.1} parent=5 // pred_check
        _
      $region54: #{tpu_custom_call.1} parent=5 // pred_check_branch
        %309 = sbr.rel (%p306) target = $region56
      $region55: #{tpu_custom_call.1} parent=5 // pred_region
        %s310 = ssub.s32 %s21, 1
        // Predicated region
        $region57: #{tpu_custom_call.1} parent=55 // pred_check
          %p311 = pneg %p110
        $region58: #{tpu_custom_call.1} parent=55 // pred_check_branch
          %313 = sbr.rel (%p311) target = $region60
        $region59: #{tpu_custom_call.1} parent=55 // pred_region
          %315 = dma.done [#allocation4], 2048
        $region60: #{tpu_custom_call.1} parent=55 // pred_fallthru
          _
        %s316 = smul.u32 16, %s26
        %p317 = scmp.lt.s32.totalorder %s316, 31
        %s318 = scalar_select %p317, %s316, 31
        %s319 = smul.addr %s318, 8
        %s320 = scalar_lea.vmem %s0, %s319
        %p321 = pneg %p47
        %p322 = pneg %p44
        %p323 = pneg %p68
        %p324 = pneg %p65
        %p325 = pneg %p89
        %p326 = pneg %p86
        %p327 = pneg %p110
        %p328 = pneg %p107
        %p329 = pneg %p131
        %p330 = pneg %p128
        %p331 = pneg %p152
        %p332 = pneg %p149
        %p333 = pneg %p173
        %p334 = pneg %p170
        %p335 = pneg %p194
        %p336 = pneg %p191
        %p337 = pneg %p215
        %p338 = pneg %p212
        %p339 = pneg %p241
        %p340 = pneg %p238
        %s341 = sand.u32 %s228, 1
        %s342 = scalar_lea.sflag [#allocation5], %s341
        %s343 = sand.u32 %s228, 1
        %s344 = smul.addr %s343, 128
        %s345 = scalar_lea.vmem [#allocation6], %s344
        %s346 = smul.u32 16, %s26
        %p347 = scmp.lt.s32.totalorder %s346, 31
        %s348 = scalar_select %p347, %s346, 31
        %s349 = smul.addr %s348, 8
        %s350 = scalar_lea.vmem %s0, %s349
        %s351 = smul.u32 16, %s26
        %s352 = smul.u32 16, %s26
        %v353 = vld [vmem:[%s350] sm:$0xff]
        %v354 = vld [vmem:[%s350 + $0x8] sm:$0xff]
        %v355 = vld [vmem:[%s350 + $0x10] sm:$0xff]
        %v356 = vld [vmem:[%s350 + $0x18] sm:$0xff]
        %v357 = vld [vmem:[%s350 + $0x20] sm:$0xff]
        %v358 = vld [vmem:[%s350 + $0x28] sm:$0xff]
        %v359 = vld [vmem:[%s350 + $0x30] sm:$0xff]
        %v360 = vld [vmem:[%s350 + $0x38] sm:$0xff]
        %v361 = vld [vmem:[%s350 + $0x40] sm:$0xff]
        %v362 = vld [vmem:[%s350 + $0x48] sm:$0xff]
        %v363 = vld [vmem:[%s350 + $0x50] sm:$0xff]
        %v364 = vld [vmem:[%s350 + $0x58] sm:$0xff]
        %v365 = vld [vmem:[%s350 + $0x60] sm:$0xff]
        %v366 = vld [vmem:[%s350 + $0x68] sm:$0xff]
        %v367 = vld [vmem:[%s350 + $0x70] sm:$0xff]
        %v368 = vld [vmem:[%s350 + $0x78] sm:$0xff]
        %v369 = vld [vmem:[%s1] sm:$0xff]
        %v370 = vld [vmem:[%s1 + $0x8] sm:$0xff]
        %v371 = vld [vmem:[%s2] sm:$0x1]
        %v373 = vperm.slane %v371, 0
        %vm375 = vcmask 130048
        %v377 = vsel %vm375, %v353, 0
        %v380 = vsel %vm375, %v354, 0
        %v383 = vsel %vm375, %v355, 0
        %v386 = vsel %vm375, %v356, 0
        %v389 = vsel %vm375, %v357, 0
        %v392 = vsel %vm375, %v358, 0
        %v395 = vsel %vm375, %v359, 0
        %v398 = vsel %vm375, %v360, 0
        %v401 = vsel %vm375, %v361, 0
        %v404 = vsel %vm375, %v362, 0
        %v407 = vsel %vm375, %v363, 0
        %v410 = vsel %vm375, %v364, 0
        %v413 = vsel %vm375, %v365, 0
        %v416 = vsel %vm375, %v366, 0
        %v419 = vsel %vm375, %v367, 0
        %v422 = vsel %vm375, %v368, 0
        %424 = vmatpush.msra.mxu0 0.0
        %425 = vmatpush.msra.mxu0 0.0
        %426 = vmatpush.msra.mxu0 0.0
        %427 = vmatpush.msra.mxu0 0.0
        %428 = vmatpush.msra.mxu0 0.0
        %429 = vmatpush.msra.mxu0 0.0
        %430 = vmatpush.msra.mxu0 0.0
        %431 = vmatpush.msra.mxu0 0.0
        %432 = vmatpush.msra.mxu0 0.0
        %433 = vmatpush.msra.mxu0 0.0
        %434 = vmatpush.msra.mxu0 0.0
        %435 = vmatpush.msra.mxu0 0.0
        %436 = vmatpush.msra.mxu0 0.0
        %437 = vmatpush.msra.mxu0 0.0
        %438 = vmatpush.msra.mxu0 %v370
        %439 = vmatpush.msra.mxu0 %v369
        %440 = vmatmul.f32.gmra.mxu0 %v377
        %v441 = vpop.f32.mrf.mxu0
        %v442 = vadd.f32 %v373, %v441
        %443 = vmatmul.f32.gmra.mxu0 %v380
        %v444 = vpop.f32.mrf.mxu0
        %v445 = vadd.f32 %v373, %v444
        %446 = vmatmul.f32.gmra.mxu0 %v383
        %v447 = vpop.f32.mrf.mxu0
        %v448 = vadd.f32 %v373, %v447
        %449 = vmatmul.f32.gmra.mxu0 %v386
        %v450 = vpop.f32.mrf.mxu0
        %v451 = vadd.f32 %v373, %v450
        %452 = vmatmul.f32.gmra.mxu0 %v389
        %v453 = vpop.f32.mrf.mxu0
        %v454 = vadd.f32 %v373, %v453
        %455 = vmatmul.f32.gmra.mxu0 %v392
        %v456 = vpop.f32.mrf.mxu0
        %v457 = vadd.f32 %v373, %v456
        %458 = vmatmul.f32.gmra.mxu0 %v395
        %v459 = vpop.f32.mrf.mxu0
        %v460 = vadd.f32 %v373, %v459
        %461 = vmatmul.f32.gmra.mxu0 %v398
        %v462 = vpop.f32.mrf.mxu0
        %v463 = vadd.f32 %v373, %v462
        %464 = vmatmul.f32.gmra.mxu0 %v401
        %v465 = vpop.f32.mrf.mxu0
        %v466 = vadd.f32 %v373, %v465
        %467 = vmatmul.f32.gmra.mxu0 %v404
        %v468 = vpop.f32.mrf.mxu0
        %v469 = vadd.f32 %v373, %v468
        %470 = vmatmul.f32.gmra.mxu0 %v407
        %v471 = vpop.f32.mrf.mxu0
        %v472 = vadd.f32 %v373, %v471
        %473 = vmatmul.f32.gmra.mxu0 %v410
        %v474 = vpop.f32.mrf.mxu0
        %v475 = vadd.f32 %v373, %v474
        %476 = vmatmul.f32.gmra.mxu0 %v413
        %v477 = vpop.f32.mrf.mxu0
        %v478 = vadd.f32 %v373, %v477
        %479 = vmatmul.f32.gmra.mxu0 %v416
        %v480 = vpop.f32.mrf.mxu0
        %v481 = vadd.f32 %v373, %v480
        %482 = vmatmul.f32.gmra.mxu0 %v419
        %v483 = vpop.f32.mrf.mxu0
        %v484 = vadd.f32 %v373, %v483
        %485 = vmatmul.f32.gmra.mxu0 %v422
        %v486 = vpop.f32.mrf.mxu0
        %v487 = vadd.f32 %v373, %v486
        %488 = vdwg.mxu0
        %v489 = vmax.f32 %v442, 0.0
        %v490 = vmax.f32 %v445, 0.0
        %v491 = vmax.f32 %v448, 0.0
        %v492 = vmax.f32 %v451, 0.0
        %v493 = vmax.f32 %v454, 0.0
        %v494 = vmax.f32 %v457, 0.0
        %v495 = vmax.f32 %v460, 0.0
        %v496 = vmax.f32 %v463, 0.0
        %v497 = vmax.f32 %v466, 0.0
        %v498 = vmax.f32 %v469, 0.0
        %v499 = vmax.f32 %v472, 0.0
        %v500 = vmax.f32 %v475, 0.0
        %v501 = vmax.f32 %v478, 0.0
        %v502 = vmax.f32 %v481, 0.0
        %v503 = vmax.f32 %v484, 0.0
        %v504 = vmax.f32 %v487, 0.0
        %v505 = vld [vmem:[#allocation3] sm:$0xff]
        %v506 = vld [vmem:[#allocation3 + $0x8] sm:$0xff]
        %v507 = vld [vmem:[#allocation3 + $0x10] sm:$0xff]
        %v508 = vld [vmem:[#allocation3 + $0x18] sm:$0xff]
        %v509 = vld [vmem:[#allocation3 + $0x20] sm:$0xff]
        %v510 = vld [vmem:[#allocation3 + $0x28] sm:$0xff]
        %v511 = vld [vmem:[#allocation3 + $0x30] sm:$0xff]
        %v512 = vld [vmem:[#allocation3 + $0x38] sm:$0xff]
        %v513 = vld [vmem:[#allocation3 + $0x40] sm:$0xff]
        %v514 = vld [vmem:[#allocation3 + $0x48] sm:$0xff]
        %v515 = vld [vmem:[#allocation3 + $0x50] sm:$0xff]
        %v516 = vld [vmem:[#allocation3 + $0x58] sm:$0xff]
        %v517 = vld [vmem:[#allocation3 + $0x60] sm:$0xff]
        %v518 = vld [vmem:[#allocation3 + $0x68] sm:$0xff]
        %v519 = vld [vmem:[#allocation3 + $0x70] sm:$0xff]
        %v520 = vld [vmem:[#allocation3 + $0x78] sm:$0xff]
        %v521 = vld [vmem:[%s4] sm:$0x1]
        %v523 = vperm.slane %v521, 0
        %525 = vmatpush.msra.mxu0 %v520
        %526 = vmatpush.msra.mxu0 %v519
        %527 = vmatpush.msra.mxu0 %v518
        %528 = vmatpush.msra.mxu0 %v517
        %529 = vmatpush.msra.mxu0 %v516
        %530 = vmatpush.msra.mxu0 %v515
        %531 = vmatpush.msra.mxu0 %v514
        %532 = vmatpush.msra.mxu0 %v513
        %533 = vmatpush.msra.mxu0 %v512
        %534 = vmatpush.msra.mxu0 %v511
        %535 = vmatpush.msra.mxu0 %v510
        %536 = vmatpush.msra.mxu0 %v509
        %537 = vmatpush.msra.mxu0 %v508
        %538 = vmatpush.msra.mxu0 %v507
        %539 = vmatpush.msra.mxu0 %v506
        %540 = vmatpush.msra.mxu0 %v505
        %541 = vmatmul.f32.gmra.mxu0 %v489
        %v542 = vpop.f32.mrf.mxu0
        %v543 = vadd.f32 %v523, %v542
        %544 = vmatmul.f32.gmra.mxu0 %v490
        %v545 = vpop.f32.mrf.mxu0
        %v546 = vadd.f32 %v523, %v545
        %547 = vmatmul.f32.gmra.mxu0 %v491
        %v548 = vpop.f32.mrf.mxu0
        %v549 = vadd.f32 %v523, %v548
        %550 = vmatmul.f32.gmra.mxu0 %v492
        %v551 = vpop.f32.mrf.mxu0
        %v552 = vadd.f32 %v523, %v551
        %553 = vmatmul.f32.gmra.mxu0 %v493
        %v554 = vpop.f32.mrf.mxu0
        %v555 = vadd.f32 %v523, %v554
        %556 = vmatmul.f32.gmra.mxu0 %v494
        %v557 = vpop.f32.mrf.mxu0
        %v558 = vadd.f32 %v523, %v557
        %559 = vmatmul.f32.gmra.mxu0 %v495
        %v560 = vpop.f32.mrf.mxu0
        %v561 = vadd.f32 %v523, %v560
        %562 = vmatmul.f32.gmra.mxu0 %v496
        %v563 = vpop.f32.mrf.mxu0
        %v564 = vadd.f32 %v523, %v563
        %565 = vmatmul.f32.gmra.mxu0 %v497
        %v566 = vpop.f32.mrf.mxu0
        %v567 = vadd.f32 %v523, %v566
        %568 = vmatmul.f32.gmra.mxu0 %v498
        %v569 = vpop.f32.mrf.mxu0
        %v570 = vadd.f32 %v523, %v569
        %571 = vmatmul.f32.gmra.mxu0 %v499
        %v572 = vpop.f32.mrf.mxu0
        %v573 = vadd.f32 %v523, %v572
        %574 = vmatmul.f32.gmra.mxu0 %v500
        %v575 = vpop.f32.mrf.mxu0
        %v576 = vadd.f32 %v523, %v575
        %577 = vmatmul.f32.gmra.mxu0 %v501
        %v578 = vpop.f32.mrf.mxu0
        %v579 = vadd.f32 %v523, %v578
        %580 = vmatmul.f32.gmra.mxu0 %v502
        %v581 = vpop.f32.mrf.mxu0
        %v582 = vadd.f32 %v523, %v581
        %583 = vmatmul.f32.gmra.mxu0 %v503
        %v584 = vpop.f32.mrf.mxu0
        %v585 = vadd.f32 %v523, %v584
        %586 = vmatmul.f32.gmra.mxu0 %v504
        %v587 = vpop.f32.mrf.mxu0
        %v588 = vadd.f32 %v523, %v587
        %589 = vdwg.mxu0
        %v590 = vmax.f32 %v543, 0.0
        %v591 = vmax.f32 %v546, 0.0
        %v592 = vmax.f32 %v549, 0.0
        %v593 = vmax.f32 %v552, 0.0
        %v594 = vmax.f32 %v555, 0.0
        %v595 = vmax.f32 %v558, 0.0
        %v596 = vmax.f32 %v561, 0.0
        %v597 = vmax.f32 %v564, 0.0
        %v598 = vmax.f32 %v567, 0.0
        %v599 = vmax.f32 %v570, 0.0
        %v600 = vmax.f32 %v573, 0.0
        %v601 = vmax.f32 %v576, 0.0
        %v602 = vmax.f32 %v579, 0.0
        %v603 = vmax.f32 %v582, 0.0
        %v604 = vmax.f32 %v585, 0.0
        %v605 = vmax.f32 %v588, 0.0
        %v606 = vld [vmem:[%s5] sm:$0xff]
        %v607 = vld [vmem:[%s5 + $0x8] sm:$0xff]
        %v608 = vld [vmem:[%s5 + $0x10] sm:$0xff]
        %v609 = vld [vmem:[%s5 + $0x18] sm:$0xff]
        %v610 = vld [vmem:[%s5 + $0x20] sm:$0xff]
        %v611 = vld [vmem:[%s5 + $0x28] sm:$0xff]
        %v612 = vld [vmem:[%s5 + $0x30] sm:$0xff]
        %v613 = vld [vmem:[%s5 + $0x38] sm:$0xff]
        %v614 = vld [vmem:[%s5 + $0x40] sm:$0xff]
        %v615 = vld [vmem:[%s5 + $0x48] sm:$0xff]
        %v616 = vld [vmem:[%s5 + $0x50] sm:$0xff]
        %v617 = vld [vmem:[%s5 + $0x58] sm:$0xff]
        %v618 = vld [vmem:[%s5 + $0x60] sm:$0xff]
        %v619 = vld [vmem:[%s5 + $0x68] sm:$0xff]
        %v620 = vld [vmem:[%s5 + $0x70] sm:$0xff]
        %v621 = vld [vmem:[%s5 + $0x78] sm:$0xff]
        %v622 = vld [vmem:[%s5 + $0x80] sm:$0xff]
        %v623 = vld [vmem:[%s5 + $0x88] sm:$0xff]
        %v624 = vld [vmem:[%s5 + $0x90] sm:$0xff]
        %v625 = vld [vmem:[%s5 + $0x98] sm:$0xff]
        %v626 = vld [vmem:[%s5 + $0xa0] sm:$0xff]
        %v627 = vld [vmem:[%s5 + $0xa8] sm:$0xff]
        %v628 = vld [vmem:[%s5 + $0xb0] sm:$0xff]
        %v629 = vld [vmem:[%s5 + $0xb8] sm:$0xff]
        %v630 = vld [vmem:[%s5 + $0xc0] sm:$0xff]
        %v631 = vld [vmem:[%s5 + $0xc8] sm:$0xff]
        %v632 = vld [vmem:[%s5 + $0xd0] sm:$0xff]
        %v633 = vld [vmem:[%s5 + $0xd8] sm:$0xff]
        %v634 = vld [vmem:[%s5 + $0xe0] sm:$0xff]
        %v635 = vld [vmem:[%s5 + $0xe8] sm:$0xff]
        %v636 = vld [vmem:[%s5 + $0xf0] sm:$0xff]
        %v637 = vld [vmem:[%s5 + $0xf8] sm:$0xff]
        %v638 = vld [vmem:[%s6] sm:$0x3]
        %v640 = vperm.slane %v638, 0
        %v641 = vperm.slane %v638, 1
        %644 = vmatpush.msra.mxu0 %v636
        %645 = vmatpush.msra.mxu0 %v634
        %646 = vmatpush.msra.mxu0 %v632
        %647 = vmatpush.msra.mxu0 %v630
        %648 = vmatpush.msra.mxu0 %v628
        %649 = vmatpush.msra.mxu0 %v626
        %650 = vmatpush.msra.mxu0 %v624
        %651 = vmatpush.msra.mxu0 %v622
        %652 = vmatpush.msra.mxu0 %v620
        %653 = vmatpush.msra.mxu0 %v618
        %654 = vmatpush.msra.mxu0 %v616
        %655 = vmatpush.msra.mxu0 %v614
        %656 = vmatpush.msra.mxu0 %v612
        %657 = vmatpush.msra.mxu0 %v610
        %658 = vmatpush.msra.mxu0 %v608
        %659 = vmatpush.msra.mxu0 %v606
        %660 = vmatmul.f32.gmra.mxu0 %v590
        %v661 = vpop.f32.mrf.mxu0
        %v662 = vadd.f32 %v640, %v661
        %663 = vmatmul.f32.gmra.mxu0 %v591
        %v664 = vpop.f32.mrf.mxu0
        %v665 = vadd.f32 %v640, %v664
        %666 = vmatmul.f32.gmra.mxu0 %v592
        %v667 = vpop.f32.mrf.mxu0
        %v668 = vadd.f32 %v640, %v667
        %669 = vmatmul.f32.gmra.mxu0 %v593
        %v670 = vpop.f32.mrf.mxu0
        %v671 = vadd.f32 %v640, %v670
        %672 = vmatmul.f32.gmra.mxu0 %v594
        %v673 = vpop.f32.mrf.mxu0
        %v674 = vadd.f32 %v640, %v673
        %675 = vmatmul.f32.gmra.mxu0 %v595
        %v676 = vpop.f32.mrf.mxu0
        %v677 = vadd.f32 %v640, %v676
        %678 = vmatmul.f32.gmra.mxu0 %v596
        %v679 = vpop.f32.mrf.mxu0
        %v680 = vadd.f32 %v640, %v679
        %681 = vmatmul.f32.gmra.mxu0 %v597
        %v682 = vpop.f32.mrf.mxu0
        %v683 = vadd.f32 %v640, %v682
        %684 = vmatmul.f32.gmra.mxu0 %v598
        %v685 = vpop.f32.mrf.mxu0
        %v686 = vadd.f32 %v640, %v685
        %687 = vmatmul.f32.gmra.mxu0 %v599
        %v688 = vpop.f32.mrf.mxu0
        %v689 = vadd.f32 %v640, %v688
        %690 = vmatmul.f32.gmra.mxu0 %v600
        %v691 = vpop.f32.mrf.mxu0
        %v692 = vadd.f32 %v640, %v691
        %693 = vmatmul.f32.gmra.mxu0 %v601
        %v694 = vpop.f32.mrf.mxu0
        %v695 = vadd.f32 %v640, %v694
        %696 = vmatmul.f32.gmra.mxu0 %v602
        %v697 = vpop.f32.mrf.mxu0
        %v698 = vadd.f32 %v640, %v697
        %699 = vmatmul.f32.gmra.mxu0 %v603
        %v700 = vpop.f32.mrf.mxu0
        %v701 = vadd.f32 %v640, %v700
        %702 = vmatmul.f32.gmra.mxu0 %v604
        %v703 = vpop.f32.mrf.mxu0
        %v704 = vadd.f32 %v640, %v703
        %705 = vmatmul.f32.gmra.mxu0 %v605
        %v706 = vpop.f32.mrf.mxu0
        %v707 = vadd.f32 %v640, %v706
        %708 = vdwg.mxu0
        %709 = vmatpush.msra.mxu0 %v637
        %710 = vmatpush.msra.mxu0 %v635
        %711 = vmatpush.msra.mxu0 %v633
        %712 = vmatpush.msra.mxu0 %v631
        %713 = vmatpush.msra.mxu0 %v629
        %714 = vmatpush.msra.mxu0 %v627
        %715 = vmatpush.msra.mxu0 %v625
        %716 = vmatpush.msra.mxu0 %v623
        %717 = vmatpush.msra.mxu0 %v621
        %718 = vmatpush.msra.mxu0 %v619
        %719 = vmatpush.msra.mxu0 %v617
        %720 = vmatpush.msra.mxu0 %v615
        %721 = vmatpush.msra.mxu0 %v613
        %722 = vmatpush.msra.mxu0 %v611
        %723 = vmatpush.msra.mxu0 %v609
        %724 = vmatpush.msra.mxu0 %v607
        %725 = vmatmul.f32.gmra.mxu0 %v590
        %v726 = vpop.f32.mrf.mxu0
        %v727 = vadd.f32 %v641, %v726
        %728 = vmatmul.f32.gmra.mxu0 %v591
        %v729 = vpop.f32.mrf.mxu0
        %v730 = vadd.f32 %v641, %v729
        %731 = vmatmul.f32.gmra.mxu0 %v592
        %v732 = vpop.f32.mrf.mxu0
        %v733 = vadd.f32 %v641, %v732
        %734 = vmatmul.f32.gmra.mxu0 %v593
        %v735 = vpop.f32.mrf.mxu0
        %v736 = vadd.f32 %v641, %v735
        %737 = vmatmul.f32.gmra.mxu0 %v594
        %v738 = vpop.f32.mrf.mxu0
        %v739 = vadd.f32 %v641, %v738
        %740 = vmatmul.f32.gmra.mxu0 %v595
        %v741 = vpop.f32.mrf.mxu0
        %v742 = vadd.f32 %v641, %v741
        %743 = vmatmul.f32.gmra.mxu0 %v596
        %v744 = vpop.f32.mrf.mxu0
        %v745 = vadd.f32 %v641, %v744
        %746 = vmatmul.f32.gmra.mxu0 %v597
        %v747 = vpop.f32.mrf.mxu0
        %v748 = vadd.f32 %v641, %v747
        %749 = vmatmul.f32.gmra.mxu0 %v598
        %v750 = vpop.f32.mrf.mxu0
        %v751 = vadd.f32 %v641, %v750
        %752 = vmatmul.f32.gmra.mxu0 %v599
        %v753 = vpop.f32.mrf.mxu0
        %v754 = vadd.f32 %v641, %v753
        %755 = vmatmul.f32.gmra.mxu0 %v600
        %v756 = vpop.f32.mrf.mxu0
        %v757 = vadd.f32 %v641, %v756
        %758 = vmatmul.f32.gmra.mxu0 %v601
        %v759 = vpop.f32.mrf.mxu0
        %v760 = vadd.f32 %v641, %v759
        %761 = vmatmul.f32.gmra.mxu0 %v602
        %v762 = vpop.f32.mrf.mxu0
        %v763 = vadd.f32 %v641, %v762
        %764 = vmatmul.f32.gmra.mxu0 %v603
        %v765 = vpop.f32.mrf.mxu0
        %v766 = vadd.f32 %v641, %v765
        %767 = vmatmul.f32.gmra.mxu0 %v604
        %v768 = vpop.f32.mrf.mxu0
        %v769 = vadd.f32 %v641, %v768
        %770 = vmatmul.f32.gmra.mxu0 %v605
        %v771 = vpop.f32.mrf.mxu0
        %v772 = vadd.f32 %v641, %v771
        %773 = vdwg.mxu0
        %v774 = vmax.f32 %v662, 0.0
        %v775 = vmax.f32 %v665, 0.0
        %v776 = vmax.f32 %v668, 0.0
        %v777 = vmax.f32 %v671, 0.0
        %v778 = vmax.f32 %v674, 0.0
        %v779 = vmax.f32 %v677, 0.0
        %v780 = vmax.f32 %v680, 0.0
        %v781 = vmax.f32 %v683, 0.0
        %v782 = vmax.f32 %v686, 0.0
        %v783 = vmax.f32 %v689, 0.0
        %v784 = vmax.f32 %v692, 0.0
        %v785 = vmax.f32 %v695, 0.0
        %v786 = vmax.f32 %v698, 0.0
        %v787 = vmax.f32 %v701, 0.0
        %v788 = vmax.f32 %v704, 0.0
        %v789 = vmax.f32 %v707, 0.0
        %v790 = vld [vmem:[%s7] sm:$0x1]
        %v792 = vperm.slane %v790, 0
        %v794 = vmul.f32 %v774, %v792
        %v795 = vmul.f32 %v775, %v792
        %v796 = vmul.f32 %v776, %v792
        %v797 = vmul.f32 %v777, %v792
        %v798 = vmul.f32 %v778, %v792
        %v799 = vmul.f32 %v779, %v792
        %v800 = vmul.f32 %v780, %v792
        %v801 = vmul.f32 %v781, %v792
        %v802 = vmul.f32 %v782, %v792
        %v803 = vmul.f32 %v783, %v792
        %v804 = vmul.f32 %v784, %v792
        %v805 = vmul.f32 %v785, %v792
        %v806 = vmul.f32 %v786, %v792
        %v807 = vmul.f32 %v787, %v792
        %v808 = vmul.f32 %v788, %v792
        %v809 = vmul.f32 %v789, %v792
        %810 = vadd.xlane.f32.xlu0 %v794
        %v811 = vpop.xlane.xlu0 %810
        %812 = vadd.xlane.f32.xlu0 %v795
        %v813 = vpop.xlane.xlu0 %812
        %814 = vadd.xlane.f32.xlu0 %v796
        %v815 = vpop.xlane.xlu0 %814
        %816 = vadd.xlane.f32.xlu0 %v797
        %v817 = vpop.xlane.xlu0 %816
        %818 = vadd.xlane.f32.xlu0 %v798
        %v819 = vpop.xlane.xlu0 %818
        %820 = vadd.xlane.f32.xlu0 %v799
        %v821 = vpop.xlane.xlu0 %820
        %822 = vadd.xlane.f32.xlu0 %v800
        %v823 = vpop.xlane.xlu0 %822
        %824 = vadd.xlane.f32.xlu0 %v801
        %v825 = vpop.xlane.xlu0 %824
        %826 = vadd.xlane.f32.xlu0 %v802
        %v827 = vpop.xlane.xlu0 %826
        %828 = vadd.xlane.f32.xlu0 %v803
        %v829 = vpop.xlane.xlu0 %828
        %830 = vadd.xlane.f32.xlu0 %v804
        %v831 = vpop.xlane.xlu0 %830
        %832 = vadd.xlane.f32.xlu0 %v805
        %v833 = vpop.xlane.xlu0 %832
        %834 = vadd.xlane.f32.xlu0 %v806
        %v835 = vpop.xlane.xlu0 %834
        %836 = vadd.xlane.f32.xlu0 %v807
        %v837 = vpop.xlane.xlu0 %836
        %838 = vadd.xlane.f32.xlu0 %v808
        %v839 = vpop.xlane.xlu0 %838
        %840 = vadd.xlane.f32.xlu0 %v809
        %v841 = vpop.xlane.xlu0 %840
        %v842 = vld [vmem:[#allocation2] sm:$0x1]
        %v844 = vperm.slane %v842, 0
        %v846 = vadd.f32 %v811, %v844
        %v847 = vadd.f32 %v813, %v844
        %v848 = vadd.f32 %v815, %v844
        %v849 = vadd.f32 %v817, %v844
        %v850 = vadd.f32 %v819, %v844
        %v851 = vadd.f32 %v821, %v844
        %v852 = vadd.f32 %v823, %v844
        %v853 = vadd.f32 %v825, %v844
        %v854 = vadd.f32 %v827, %v844
        %v855 = vadd.f32 %v829, %v844
        %v856 = vadd.f32 %v831, %v844
        %v857 = vadd.f32 %v833, %v844
        %v858 = vadd.f32 %v835, %v844
        %v859 = vadd.f32 %v837, %v844
        %v860 = vadd.f32 %v839, %v844
        %v861 = vadd.f32 %v841, %v844
        %v862 = vlaneseq
        %v863 = vand.u32 %v862, 127
        %vm864 = vcmp.eq.s32.totalorder %v863, 4
        %866 = vset.pattern.permute.xlu0 0
        %867 = vperm.xlu0 %866, %v846
        %v868 = vpop.permute.xlu0 %867
        %871 = vset.pattern.permute.xlu0 0
        %872 = vperm.xlu0 %871, %v847
        %v873 = vpop.permute.xlu0 %872
        %876 = vset.pattern.permute.xlu0 0
        %877 = vperm.xlu0 %876, %v848
        %v878 = vpop.permute.xlu0 %877
        %881 = vset.pattern.permute.xlu0 0
        %882 = vperm.xlu0 %881, %v849
        %v883 = vpop.permute.xlu0 %882
        %886 = vset.pattern.permute.xlu0 0
        %887 = vperm.xlu0 %886, %v850
        %v888 = vpop.permute.xlu0 %887
        %891 = vset.pattern.permute.xlu0 0
        %892 = vperm.xlu0 %891, %v851
        %v893 = vpop.permute.xlu0 %892
        %896 = vset.pattern.permute.xlu0 0
        %897 = vperm.xlu0 %896, %v852
        %v898 = vpop.permute.xlu0 %897
        %901 = vset.pattern.permute.xlu0 0
        %902 = vperm.xlu0 %901, %v853
        %v903 = vpop.permute.xlu0 %902
        %906 = vset.pattern.permute.xlu0 0
        %907 = vperm.xlu0 %906, %v854
        %v908 = vpop.permute.xlu0 %907
        %911 = vset.pattern.permute.xlu0 0
        %912 = vperm.xlu0 %911, %v855
        %v913 = vpop.permute.xlu0 %912
        %916 = vset.pattern.permute.xlu0 0
        %917 = vperm.xlu0 %916, %v856
        %v918 = vpop.permute.xlu0 %917
        %921 = vset.pattern.permute.xlu0 0
        %922 = vperm.xlu0 %921, %v857
        %v923 = vpop.permute.xlu0 %922
        %926 = vset.pattern.permute.xlu0 0
        %927 = vperm.xlu0 %926, %v858
        %v928 = vpop.permute.xlu0 %927
        %931 = vset.pattern.permute.xlu0 0
        %932 = vperm.xlu0 %931, %v859
        %v933 = vpop.permute.xlu0 %932
        %936 = vset.pattern.permute.xlu0 0
        %937 = vperm.xlu0 %936, %v860
        %v938 = vpop.permute.xlu0 %937
        %941 = vset.pattern.permute.xlu0 0
        %942 = vperm.xlu0 %941, %v861
        %v943 = vpop.permute.xlu0 %942
        %v945 = vsel %vm864, %v868, 0.0
        %v946 = vsel %vm864, %v873, 0.0
        %v947 = vsel %vm864, %v878, 0.0
        %v948 = vsel %vm864, %v883, 0.0
        %v949 = vsel %vm864, %v888, 0.0
        %v950 = vsel %vm864, %v893, 0.0
        %v951 = vsel %vm864, %v898, 0.0
        %v952 = vsel %vm864, %v903, 0.0
        %v953 = vsel %vm864, %v908, 0.0
        %v954 = vsel %vm864, %v913, 0.0
        %v955 = vsel %vm864, %v918, 0.0
        %v956 = vsel %vm864, %v923, 0.0
        %v957 = vsel %vm864, %v928, 0.0
        %v958 = vsel %vm864, %v933, 0.0
        %v959 = vsel %vm864, %v938, 0.0
        %v960 = vsel %vm864, %v943, 0.0
        %v961 = vadd.f32 %v727, %v945
        %v962 = vadd.f32 %v730, %v946
        %v963 = vadd.f32 %v733, %v947
        %v964 = vadd.f32 %v736, %v948
        %v965 = vadd.f32 %v739, %v949
        %v966 = vadd.f32 %v742, %v950
        %v967 = vadd.f32 %v745, %v951
        %v968 = vadd.f32 %v748, %v952
        %v969 = vadd.f32 %v751, %v953
        %v970 = vadd.f32 %v754, %v954
        %v971 = vadd.f32 %v757, %v955
        %v972 = vadd.f32 %v760, %v956
        %v973 = vadd.f32 %v763, %v957
        %v974 = vadd.f32 %v766, %v958
        %v975 = vadd.f32 %v769, %v959
        %v976 = vadd.f32 %v772, %v960
        %977 = vst [vmem:[%s345] sm:$0xff] %v961
        %978 = vst [vmem:[%s345 + $0x8] sm:$0xff] %v962
        %979 = vst [vmem:[%s345 + $0x10] sm:$0xff] %v963
        %980 = vst [vmem:[%s345 + $0x18] sm:$0xff] %v964
        %981 = vst [vmem:[%s345 + $0x20] sm:$0xff] %v965
        %982 = vst [vmem:[%s345 + $0x28] sm:$0xff] %v966
        %983 = vst [vmem:[%s345 + $0x30] sm:$0xff] %v967
        %984 = vst [vmem:[%s345 + $0x38] sm:$0xff] %v968
        %985 = vst [vmem:[%s345 + $0x40] sm:$0xff] %v969
        %986 = vst [vmem:[%s345 + $0x48] sm:$0xff] %v970
        %987 = vst [vmem:[%s345 + $0x50] sm:$0xff] %v971
        %988 = vst [vmem:[%s345 + $0x58] sm:$0xff] %v972
        %989 = vst [vmem:[%s345 + $0x60] sm:$0xff] %v973
        %990 = vst [vmem:[%s345 + $0x68] sm:$0xff] %v974
        %991 = vst [vmem:[%s345 + $0x70] sm:$0xff] %v975
        %992 = vst [vmem:[%s345 + $0x78] sm:$0xff] %v976
        %s993 = sand.u32 %s228, 1
        %s994 = scalar_lea.sflag [#allocation5], %s993
        %s995 = sand.u32 %s228, 1
        %s996 = smul.addr %s995, 128
        %s997 = scalar_lea.vmem [#allocation6], %s996
        // Predicated region
        $region61: #{tpu_custom_call.1} parent=55 // pred_check
          %p998 = pneg %p238
        $region62: #{tpu_custom_call.1} parent=55 // pred_check_branch
          %1000 = sbr.rel (%p998) target = $region64
        $region63: #{tpu_custom_call.1} parent=55 // pred_region
          %s1001 = smul.u32 16, %s26
          %1003 = vsyncadd %s994, 0
          %s1004 = smul.addr %s1001, 8
          %s1005 = scalar_lea.hbm %s9, %s1004
          %s1006 = sshll.u32 %s997, 4
          %s1007 = int_to_ptr.vmem [resolvable:$true] %s1006
          %s1008 = sshll.u32 %s1005, 4
          %s1009 = int_to_ptr.hbm [resolvable:$true] %s1008
          %1014 = dma.vmem_to_hbm [thread:$0]  %s1007, 2048, %s1009, %s994, 128, 128, 8
        $region64: #{tpu_custom_call.1} parent=55 // pred_fallthru
          _
      $region56: #{tpu_custom_call.1} parent=5 // pred_fallthru
        _
      %p1015 = scmp.le.s32.totalorder 2, %s21
      // Predicated region
      $region65: #{tpu_custom_call.1} parent=5 // pred_check
        %p1016 = pneg %p1015
      $region66: #{tpu_custom_call.1} parent=5 // pred_check_branch
        %1018 = sbr.rel (%p1016) target = $region68
      $region67: #{tpu_custom_call.1} parent=5 // pred_region
        %s1019 = ssub.s32 %s21, 2
        // Predicated region
        $region69: #{tpu_custom_call.1} parent=67 // pred_check
          %p1020 = pneg %p244
        $region70: #{tpu_custom_call.1} parent=67 // pred_check_branch
          %1022 = sbr.rel (%p1020) target = $region72
        $region71: #{tpu_custom_call.1} parent=67 // pred_region
          %s1023 = sand.u32 %s229, 1
          %s1024 = scalar_lea.sflag [#allocation5], %s1023
          %s1025 = sand.u32 %s229, 1
          %s1026 = smul.addr %s1025, 128
          %s1027 = scalar_lea.vmem [#allocation6], %s1026
          %1029 = dma.done %s1024, 2048
        $region72: #{tpu_custom_call.1} parent=67 // pred_fallthru
          _
      $region68: #{tpu_custom_call.1} parent=5 // pred_fallthru
        _
    $region6: #{tpu_custom_call.1} parent=1 // loop_footer
      %s25 = sadd.s32 1, %s21
    $region7: #{tpu_custom_call.1} parent=1 // loop_footer_branch
      %20 = sbr.rel target = $region3
    $region8: #{tpu_custom_call.1} parent=1 // loop_exit
      _
    %1030 = vsyncpa [#allocation4], 1
    %s1031 = scalar_lea.sflag [#allocation4], 1
    %1032 = vsyncpa %s1031, 1
    %1033 = vsyncpa [#allocation5], 1
    %s1034 = scalar_lea.sflag [#allocation5], 1
    %1035 = vsyncpa %s1034, 1

</llo_original>
